<compile_context>
chip_gen: v6e
topology: v6e:2x2x1
jax: 0.10.0
libtpu: 0.0.40
codegen_flags: <defaults>
</compile_context>

<pallas_src>
import functools

import jax
import jax.numpy as jnp
import numpy as np
from jax.experimental import pallas as pl
from jax.experimental.pallas import tpu as pltpu


def _detr_loss_kernel(logits_ref, labels_ref, pb_ref, tb_ref, out_ref,
                      ce_acc, l1_acc, cnt_acc,
                      *, n_rows, tile_rows, tiles_per_core, any_padding):
    c = pl.program_id(0)          # core index (parallel axis)
    i = pl.program_id(1)          # row-tile index within this core (reduction)

    @pl.when(i == 0)
    def _init():
        ce_acc[...] = jnp.zeros_like(ce_acc)
        l1_acc[...] = jnp.zeros_like(l1_acc)
        cnt_acc[...] = jnp.zeros_like(cnt_acc)

    logits = logits_ref[...].astype(jnp.float32)      # [TN, C]
    labels = labels_ref[...]                          # [TN, 1] int32
    pb = pb_ref[...].astype(jnp.float32)              # [TN, 4]
    tb = tb_ref[...].astype(jnp.float32)              # [TN, 4]
    tn, ccls = logits.shape

    # ---- per-row cross-entropy: logsumexp(logits) - logits[y] (shift-stable) ----
    row_max = jnp.max(logits, axis=-1, keepdims=True)                 # [TN,1]
    shifted = logits - row_max
    lse = jnp.log(jnp.sum(jnp.exp(shifted), axis=-1, keepdims=True))  # [TN,1]
    cls_iota = jax.lax.broadcasted_iota(jnp.int32, (tn, ccls), 1)
    sel = jnp.sum(jnp.where(cls_iota == labels, shifted, 0.0),
                  axis=-1, keepdims=True)                             # [TN,1]
    ce_rows = lse - sel                                               # [TN,1]

    valid = labels > 0                                                # [TN,1] bool
    l1_abs = jnp.abs(pb - tb)                                         # [TN,4]

    def _accumulate(ce_vals, l1_vals, cnt_vals):
        # Pure VALU column adds; cross-sublane collapse deferred to finalize.
        ce_acc[...] += ce_vals
        l1_acc[...] += l1_vals
        cnt_acc[...] += cnt_vals

    if any_padding:
        # Only tiles whose logical row range touches rows >= N pay the mask.
        logical_start = (c * tiles_per_core + i) * tile_rows
        needs_mask = logical_start + tile_rows > n_rows

        @pl.when(needs_mask)
        def _masked():
            row_ids = (jax.lax.broadcasted_iota(jnp.int32, (tn, 1), 0)
                       + logical_start)
            in_range = row_ids < n_rows
            vmask = jnp.logical_and(valid, in_range)
            # where() (not multiply-by-zero) so NaN/Inf garbage in the padded
            # rows never propagates into the accumulators.
            _accumulate(jnp.where(in_range, ce_rows, 0.0),
                        jnp.where(vmask, l1_abs, 0.0),
                        vmask.astype(jnp.float32))

        @pl.when(jnp.logical_not(needs_mask))
        def _unmasked():
            _accumulate(ce_rows,
                        jnp.where(valid, l1_abs, 0.0),
                        valid.astype(jnp.float32))
    else:
        _accumulate(ce_rows,
                    jnp.where(valid, l1_abs, 0.0),
                    valid.astype(jnp.float32))

    @pl.when(i == pl.num_programs(1) - 1)
    def _finalize():
        ce_sum = jnp.sum(ce_acc[...])
        l1_sum = jnp.sum(l1_acc[...])
        cnt = jnp.sum(cnt_acc[...])
        lane = jax.lax.broadcasted_iota(jnp.int32, (8, 128), 1)
        tile = jnp.where(lane == 0, ce_sum,
               jnp.where(lane == 1, l1_sum,
               jnp.where(lane == 2, cnt, jnp.float32(0.0))))
        out_ref[...] = tile.reshape(1, 8, 128)


def detr_loss(outputs, targets_boxes, targets_labels, num_classes, weight_dict,
              *, max_tile_rows=None):
    pred_logits = outputs['pred_logits']        # [B, Q, num_classes+1], native dtype
    pred_boxes = outputs['pred_boxes']          # [B, Q, 4], native dtype
    B, Q, Cp1 = pred_logits.shape
    assert Cp1 == num_classes + 1
    N = B * Q

    # Layout-preserving reshapes only; dtype casts happen per tile in-kernel.
    logits = pred_logits.reshape(N, Cp1)
    labels = targets_labels.reshape(N, 1).astype(jnp.int32)
    pb = pred_boxes.reshape(N, 4)
    tb = targets_boxes.reshape(N, 4)

    in_itemsize = logits.dtype.itemsize
    bx_itemsize = pb.dtype.itemsize

    # ---- tile sizing by bytes (live-VMEM budget, portable to v7x's 64 MiB/TC) ----
    vmem_budget = 20 << 20
    bytes_per_row = (Cp1 * (2 * in_itemsize + 4 * 4)   # dbuf logits + ~4 f32 temps
                     + 2 * 4                            # labels (int32, dbuf)
                     + 2 * 2 * 4 * bx_itemsize          # pred/target boxes, dbuf
                     + 6 * 4)                           # f32 column accumulators
    cap_rows = int(vmem_budget // bytes_per_row)
    cap_rows = max(1024, min(cap_rows, 32768))
    if max_tile_rows is not None:                       # test/override hook
        cap_rows = max(8, min(cap_rows, int(max_tile_rows)))

    if N <= cap_rows:
        tile_rows = N                                   # single full-extent block
    else:
        tile_rows = (cap_rows // 8) * 8                 # sublane-aligned big tile

    num_tiles = int(pl.cdiv(N, tile_rows))
    num_cores = 2 if num_tiles >= 2 else 1              # v7x 2-TC split; no-op elsewhere
    tiles_per_core = int(pl.cdiv(num_tiles, num_cores))
    any_padding = (num_cores * tiles_per_core * tile_rows) != N
    needs_clamp = (num_cores * tiles_per_core) != num_tiles
    max_block = num_tiles - 1

    if needs_clamp:
        # Fully-out-of-range tail tiles re-read the last real block; the kernel
        # masks all of their rows, so the duplicate data contributes nothing.
        def row_block(c, i):
            return (jnp.minimum(c * tiles_per_core + i, max_block), 0)
    else:
        def row_block(c, i):
            return (c * tiles_per_core + i, 0)

    kernel = functools.partial(
        _detr_loss_kernel,
        n_rows=N,
        tile_rows=tile_rows,
        tiles_per_core=tiles_per_core,
        any_padding=any_padding,
    )

    vmem_limit = int(min(max(2 * bytes_per_row * tile_rows, 32 << 20), 48 << 20))

    partials = pl.pallas_call(
        kernel,
        out_shape=jax.ShapeDtypeStruct((num_cores, 8, 128), jnp.float32),
        grid_spec=pltpu.PrefetchScalarGridSpec(
            num_scalar_prefetch=0,
            grid=(num_cores, tiles_per_core),
            in_specs=[
                pl.BlockSpec((tile_rows, Cp1), row_block),   # logits (native dtype)
                pl.BlockSpec((tile_rows, 1), row_block),     # labels (int32)
                pl.BlockSpec((tile_rows, 4), row_block),     # pred boxes
                pl.BlockSpec((tile_rows, 4), row_block),     # target boxes
            ],
            out_specs=pl.BlockSpec((1, 8, 128), lambda c, i: (c, 0, 0)),
            scratch_shapes=[
                pltpu.VMEM((tile_rows, 1), jnp.float32),     # CE column acc
                pltpu.VMEM((tile_rows, 4), jnp.float32),     # |pb-tb| column acc
                pltpu.VMEM((tile_rows, 1), jnp.float32),     # valid-count acc
            ],
        ),
        compiler_params=pltpu.CompilerParams(
            dimension_semantics=("parallel", "arbitrary"),
            vmem_limit_bytes=vmem_limit),
    )(logits, labels, pb, tb)

    # Cross-core reduction + normalization + loss weighting (tiny scalar XLA ops).
    ce_sum = jnp.sum(partials[:, 0, 0])
    l1_sum = jnp.sum(partials[:, 0, 1])
    n_valid = jnp.sum(partials[:, 0, 2])

    class_loss = ce_sum / jnp.float32(N)
    denom = n_valid * jnp.float32(4.0)
    bbox_loss = jnp.where(denom > 0.0,
                          l1_sum / jnp.maximum(denom, jnp.float32(1.0)),
                          jnp.float32(0.0))
    total_loss = (jnp.float32(weight_dict['class']) * class_loss
                  + jnp.float32(weight_dict['bbox']) * bbox_loss)
    return {'total_loss': total_loss, 'class_loss': class_loss,
            'bbox_loss': bbox_loss}


def detr_loss_ref(outputs, targets_boxes, targets_labels, num_classes, weight_dict):
    """Pure-JAX reference mirroring the PyTorch forward."""
    pred_logits = outputs['pred_logits'].astype(jnp.float32)
    pred_boxes = outputs['pred_boxes'].astype(jnp.float32)
    Cp1 = num_classes + 1
    logits = pred_logits.reshape(-1, Cp1)
    labels = targets_labels.reshape(-1)
    logp = jax.nn.log_softmax(logits, axis=-1)
    class_loss = -jnp.mean(jnp.take_along_axis(logp, labels[:, None], axis=-1))
    valid = labels > 0
    pb = pred_boxes.reshape(-1, 4)
    tb = targets_boxes.astype(jnp.float32).reshape(-1, 4)
    n_valid = jnp.sum(valid)
    l1 = jnp.sum(jnp.abs(pb - tb) * valid[:, None].astype(jnp.float32))
    bbox_loss = jnp.where(n_valid > 0, l1 / jnp.maximum(n_valid * 4, 1), 0.0)
    total = weight_dict['class'] * class_loss + weight_dict['bbox'] * bbox_loss
    return {'total_loss': total, 'class_loss': class_loss, 'bbox_loss': bbox_loss}


if __name__ == "__main__":
    key = jax.random.PRNGKey(0)
    weight_dict = {'class': 1.0, 'bbox': 5.0}

    def make_case(k, B, Q, num_classes, dtype):
        k1, k2, k3, k4 = jax.random.split(k, 4)
        pred_logits = jax.random.normal(
            k1, (B, Q, num_classes + 1), dtype=jnp.float32).astype(dtype)
        pred_boxes = jax.nn.sigmoid(
            jax.random.normal(k2, (B, Q, 4), dtype=jnp.float32)).astype(dtype)
        targets_boxes = jax.random.uniform(k3, (B, Q, 4), dtype=jnp.float32)
        targets_labels = jax.random.randint(
            k4, (B, Q), 0, num_classes + 1, dtype=jnp.int32)
        return ({'pred_logits': pred_logits, 'pred_boxes': pred_boxes},
                targets_boxes, targets_labels)

    kcase1, kcase2 = jax.random.split(key)

    # Case 1: tiny DETR-style shapes (single tile, single core, f32 inputs).
    outputs, tboxes, tlabels = make_case(kcase1, 2, 8, 3, jnp.float32)
    res = detr_loss(outputs, tboxes, tlabels, 3, weight_dict)
    jax.block_until_ready(res['total_loss'])
    ref = detr_loss_ref(outputs, tboxes, tlabels, 3, weight_dict)
    for name in ('total_loss', 'class_loss', 'bbox_loss'):
        np.testing.assert_allclose(np.asarray(res[name]), np.asarray(ref[name]),
                                   rtol=1e-5, atol=1e-5)

    # Case 2: larger ragged N (= 2100) with bf16 model outputs.
    outputs2, tboxes2, tlabels2 = make_case(kcase2, 3, 700, 91, jnp.bfloat16)
    ref2 = detr_loss_ref(outputs2, tboxes2, tlabels2, 91, weight_dict)

    # 2a: automatic (byte-sized) tile -> single large tile at this N.
    res2a = detr_loss(outputs2, tboxes2, tlabels2, 91, weight_dict)
    jax.block_until_ready(res2a['total_loss'])
    # 2b: forced small tile -> 5 tiles, 2-core split, ragged + clamped tail tile.
    res2b = detr_loss(outputs2, tboxes2, tlabels2, 91, weight_dict,
                      max_tile_rows=512)
    jax.block_until_ready(res2b['total_loss'])
    for name in ('total_loss', 'class_loss', 'bbox_loss'):
        np.testing.assert_allclose(np.asarray(res2a[name]), np.asarray(ref2[name]),
                                   rtol=1e-4, atol=1e-4)
        np.testing.assert_allclose(np.asarray(res2b[name]), np.asarray(ref2[name]),
                                   rtol=1e-4, atol=1e-4)

    # Case 3: no valid boxes -> bbox_loss must be exactly 0.
    zero_labels = jnp.zeros((2, 8), dtype=jnp.int32)
    res3 = detr_loss(outputs, tboxes, zero_labels, 3, weight_dict)
    jax.block_until_ready(res3['total_loss'])
    np.testing.assert_allclose(np.asarray(res3['bbox_loss']), 0.0, atol=1e-7)

    print("KERNEL_OK")
</pallas_src>

<mosaic_0001>
module attributes {stable_mosaic.version = 11 : i64} {
  func.func @_detr_loss_kernel(%arg0: i32, %arg1: i32, %arg2: memref<16x4xf32, #tpu.memory_space<vmem>>, %arg3: memref<16x1xi32, #tpu.memory_space<vmem>>, %arg4: memref<16x4xf32, #tpu.memory_space<vmem>>, %arg5: memref<16x4xf32, #tpu.memory_space<vmem>>, %arg6: memref<1x8x128xf32, #tpu.memory_space<vmem>>, %arg7: memref<16x1xf32, #tpu.memory_space<vmem>>, %arg8: memref<16x4xf32, #tpu.memory_space<vmem>>, %arg9: memref<16x1xf32, #tpu.memory_space<vmem>>) attributes {dimension_semantics = [#tpu.dimension_semantics<parallel>, #tpu.dimension_semantics<arbitrary>], iteration_bounds = array<i64: 1, 1>, scalar_prefetch = 0 : i64, scratch_operands = 3 : i64, tpu.core_type = #tpu.core_type<tc>, window_params = [{transform_indices = @transform_0, window_bounds = array<i64: 16, 4>}, {transform_indices = @transform_1, window_bounds = array<i64: 16, 1>}, {transform_indices = @transform_2, window_bounds = array<i64: 16, 4>}, {transform_indices = @transform_3, window_bounds = array<i64: 16, 4>}, {transform_indices = @transform_4, window_bounds = array<i64: 1, 8, 128>}]} {
    %c0_i32 = arith.constant 0 : i32
    %0 = arith.cmpi eq, %arg1, %c0_i32 : i32
    %1 = arith.extui %0 : i1 to i32
    %c0_i32_0 = arith.constant 0 : i32
    %2 = arith.cmpi ne, %1, %c0_i32_0 : i32
    scf.if %2 {
      %cst_27 = arith.constant 0.000000e+00 : f32
      %45 = vector.broadcast %cst_27 : f32 to vector<16x1xf32>
      %c0_28 = arith.constant 0 : index
      %c0_29 = arith.constant 0 : index
      %46 = vector.load %arg7[%c0_28, %c0_29] : memref<16x1xf32, #tpu.memory_space<vmem>>, vector<16x1xf32>
      tpu.vector_store %arg7[%c0_28, %c0_29], %45 {strides = array<i32>} : memref<16x1xf32, #tpu.memory_space<vmem>>, vector<16x1xf32>,
      %cst_30 = arith.constant 0.000000e+00 : f32
      %47 = vector.broadcast %cst_30 : f32 to vector<16x4xf32>
      %c0_31 = arith.constant 0 : index
      %c0_32 = arith.constant 0 : index
      %48 = vector.load %arg8[%c0_31, %c0_32] : memref<16x4xf32, #tpu.memory_space<vmem>>, vector<16x4xf32>
      tpu.vector_store %arg8[%c0_31, %c0_32], %47 {strides = array<i32>} : memref<16x4xf32, #tpu.memory_space<vmem>>, vector<16x4xf32>,
      %cst_33 = arith.constant 0.000000e+00 : f32
      %49 = vector.broadcast %cst_33 : f32 to vector<16x1xf32>
      %c0_34 = arith.constant 0 : index
      %c0_35 = arith.constant 0 : index
      %50 = vector.load %arg9[%c0_34, %c0_35] : memref<16x1xf32, #tpu.memory_space<vmem>>, vector<16x1xf32>
      tpu.vector_store %arg9[%c0_34, %c0_35], %49 {strides = array<i32>} : memref<16x1xf32, #tpu.memory_space<vmem>>, vector<16x1xf32>,
    } else {
    }
    %c0 = arith.constant 0 : index
    %c0_1 = arith.constant 0 : index
    %3 = vector.load %arg2[%c0, %c0_1] : memref<16x4xf32, #tpu.memory_space<vmem>>, vector<16x4xf32>
    %c0_2 = arith.constant 0 : index
    %c0_3 = arith.constant 0 : index
    %4 = vector.load %arg3[%c0_2, %c0_3] : memref<16x1xi32, #tpu.memory_space<vmem>>, vector<16x1xi32>
    %c0_4 = arith.constant 0 : index
    %c0_5 = arith.constant 0 : index
    %5 = vector.load %arg4[%c0_4, %c0_5] : memref<16x4xf32, #tpu.memory_space<vmem>>, vector<16x4xf32>
    %c0_6 = arith.constant 0 : index
    %c0_7 = arith.constant 0 : index
    %6 = vector.load %arg5[%c0_6, %c0_7] : memref<16x4xf32, #tpu.memory_space<vmem>>, vector<16x4xf32>
    %cst = arith.constant dense<0xFF800000> : vector<16xf32>
    %7 = vector.multi_reduction <maximumf>, %3, %cst [1] : vector<16x4xf32> to vector<16xf32>
    %8 = vector.shape_cast %7 : vector<16xf32> to vector<16x1xf32>
    %9 = vector.broadcast %8 : vector<16x1xf32> to vector<16x4xf32>
    %10 = arith.subf %3, %9 : vector<16x4xf32>
    %11 = math.exp %10 : vector<16x4xf32>
    %cst_8 = arith.constant dense<0.000000e+00> : vector<16xf32>
    %12 = vector.multi_reduction <add>, %11, %cst_8 [1] : vector<16x4xf32> to vector<16xf32>
    %13 = vector.shape_cast %12 : vector<16xf32> to vector<16x1xf32>
    %14 = math.log %13 : vector<16x1xf32>
    %15 = tpu.iota {dimensions = array<i32: 1>} : vector<16x4xi32>
    %16 = vector.broadcast %4 : vector<16x1xi32> to vector<16x4xi32>
    %17 = arith.cmpi eq, %15, %16 : vector<16x4xi32>
    %cst_9 = arith.constant 0.000000e+00 : f32
    %18 = vector.broadcast %cst_9 : f32 to vector<16x4xf32>
    %19 = arith.select %17, %10, %18 : vector<16x4xi1>, vector<16x4xf32>
    %cst_10 = arith.constant dense<0.000000e+00> : vector<16xf32>
    %20 = vector.multi_reduction <add>, %19, %cst_10 [1] : vector<16x4xf32> to vector<16xf32>
    %21 = vector.shape_cast %20 : vector<16xf32> to vector<16x1xf32>
    %22 = arith.subf %14, %21 : vector<16x1xf32>
    %c0_i32_11 = arith.constant 0 : i32
    %23 = vector.broadcast %c0_i32_11 : i32 to vector<16x1xi32>
    %24 = arith.cmpi sgt, %4, %23 : vector<16x1xi32>
    %25 = arith.subf %5, %6 : vector<16x4xf32>
    %26 = math.absf %25 : vector<16x4xf32>
    %cst_12 = arith.constant 0.000000e+00 : f32
    %27 = vector.shape_cast %24 : vector<16x1xi1> to vector<16x1xi1>
    %28 = vector.broadcast %27 : vector<16x1xi1> to vector<16x4xi1>
    %29 = vector.broadcast %cst_12 : f32 to vector<16x4xf32>
    %30 = arith.select %28, %26, %29 : vector<16x4xi1>, vector<16x4xf32>
    %31 = arith.extui %24 : vector<16x1xi1> to vector<16x1xi32>
    %32 = arith.sitofp %31 : vector<16x1xi32> to vector<16x1xf32>
    %c0_13 = arith.constant 0 : index
    %c0_14 = arith.constant 0 : index
    %33 = vector.load %arg7[%c0_13, %c0_14] : memref<16x1xf32, #tpu.memory_space<vmem>>, vector<16x1xf32>
    %34 = arith.addf %33, %22 : vector<16x1xf32>
    %c0_15 = arith.constant 0 : index
    %c0_16 = arith.constant 0 : index
    %35 = vector.load %arg7[%c0_15, %c0_16] : memref<16x1xf32, #tpu.memory_space<vmem>>, vector<16x1xf32>
    tpu.vector_store %arg7[%c0_15, %c0_16], %34 {strides = array<i32>} : memref<16x1xf32, #tpu.memory_space<vmem>>, vector<16x1xf32>,
    %c0_17 = arith.constant 0 : index
    %c0_18 = arith.constant 0 : index
    %36 = vector.load %arg8[%c0_17, %c0_18] : memref<16x4xf32, #tpu.memory_space<vmem>>, vector<16x4xf32>
    %37 = arith.addf %36, %30 : vector<16x4xf32>
    %c0_19 = arith.constant 0 : index
    %c0_20 = arith.constant 0 : index
    %38 = vector.load %arg8[%c0_19, %c0_20] : memref<16x4xf32, #tpu.memory_space<vmem>>, vector<16x4xf32>
    tpu.vector_store %arg8[%c0_19, %c0_20], %37 {strides = array<i32>} : memref<16x4xf32, #tpu.memory_space<vmem>>, vector<16x4xf32>,
    %c0_21 = arith.constant 0 : index
    %c0_22 = arith.constant 0 : index
    %39 = vector.load %arg9[%c0_21, %c0_22] : memref<16x1xf32, #tpu.memory_space<vmem>>, vector<16x1xf32>
    %40 = arith.addf %39, %32 : vector<16x1xf32>
    %c0_23 = arith.constant 0 : index
    %c0_24 = arith.constant 0 : index
    %41 = vector.load %arg9[%c0_23, %c0_24] : memref<16x1xf32, #tpu.memory_space<vmem>>, vector<16x1xf32>
    tpu.vector_store %arg9[%c0_23, %c0_24], %40 {strides = array<i32>} : memref<16x1xf32, #tpu.memory_space<vmem>>, vector<16x1xf32>,
    %c0_i32_25 = arith.constant 0 : i32
    %42 = arith.cmpi eq, %arg1, %c0_i32_25 : i32
    %43 = arith.extui %42 : i1 to i32
    %c0_i32_26 = arith.constant 0 : i32
    %44 = arith.cmpi ne, %43, %c0_i32_26 : i32
    scf.if %44 {
      %c0_27 = arith.constant 0 : index
      %c0_28 = arith.constant 0 : index
      %45 = vector.load %arg7[%c0_27, %c0_28] : memref<16x1xf32, #tpu.memory_space<vmem>>, vector<16x1xf32>
      %46 = vector.shape_cast %45 : vector<16x1xf32> to vector<1x16x1xf32>
      %cst_29 = arith.constant dense<0.000000e+00> : vector<1xf32>
      %47 = vector.multi_reduction <add>, %46, %cst_29 [1, 2] : vector<1x16x1xf32> to vector<1xf32>
      %48 = vector.shape_cast %47 : vector<1xf32> to vector<1x1x1xf32>
      %49 = vector.extract %48[0, 0, 0] : f32 from vector<1x1x1xf32>
      %c0_30 = arith.constant 0 : index
      %c0_31 = arith.constant 0 : index
      %50 = vector.load %arg8[%c0_30, %c0_31] : memref<16x4xf32, #tpu.memory_space<vmem>>, vector<16x4xf32>
      %51 = vector.shape_cast %50 : vector<16x4xf32> to vector<1x16x4xf32>
      %cst_32 = arith.constant dense<0.000000e+00> : vector<1xf32>
      %52 = vector.multi_reduction <add>, %51, %cst_32 [1, 2] : vector<1x16x4xf32> to vector<1xf32>
      %53 = vector.shape_cast %52 : vector<1xf32> to vector<1x1x1xf32>
      %54 = vector.extract %53[0, 0, 0] : f32 from vector<1x1x1xf32>
      %c0_33 = arith.constant 0 : index
      %c0_34 = arith.constant 0 : index
      %55 = vector.load %arg9[%c0_33, %c0_34] : memref<16x1xf32, #tpu.memory_space<vmem>>, vector<16x1xf32>
      %56 = vector.shape_cast %55 : vector<16x1xf32> to vector<1x16x1xf32>
      %cst_35 = arith.constant dense<0.000000e+00> : vector<1xf32>
      %57 = vector.multi_reduction <add>, %56, %cst_35 [1, 2] : vector<1x16x1xf32> to vector<1xf32>
      %58 = vector.shape_cast %57 : vector<1xf32> to vector<1x1x1xf32>
      %59 = vector.extract %58[0, 0, 0] : f32 from vector<1x1x1xf32>
      %60 = tpu.iota {dimensions = array<i32: 1>} : vector<8x128xi32>
      %c0_i32_36 = arith.constant 0 : i32
      %61 = vector.broadcast %c0_i32_36 : i32 to vector<8x128xi32>
      %62 = arith.cmpi eq, %60, %61 : vector<8x128xi32>
      %c1_i32 = arith.constant 1 : i32
      %63 = vector.broadcast %c1_i32 : i32 to vector<8x128xi32>
      %64 = arith.cmpi eq, %60, %63 : vector<8x128xi32>
      %c2_i32 = arith.constant 2 : i32
      %65 = vector.broadcast %c2_i32 : i32 to vector<8x128xi32>
      %66 = arith.cmpi eq, %60, %65 : vector<8x128xi32>
      %cst_37 = arith.constant 0.000000e+00 : f32
      %67 = vector.broadcast %59 : f32 to vector<8x128xf32>
      %68 = vector.broadcast %cst_37 : f32 to vector<8x128xf32>
      %69 = arith.select %66, %67, %68 : vector<8x128xi1>, vector<8x128xf32>
      %70 = vector.broadcast %54 : f32 to vector<8x128xf32>
      %71 = arith.select %64, %70, %69 : vector<8x128xi1>, vector<8x128xf32>
      %72 = vector.broadcast %49 : f32 to vector<8x128xf32>
      %73 = arith.select %62, %72, %71 : vector<8x128xi1>, vector<8x128xf32>
      %74 = vector.shape_cast %73 : vector<8x128xf32> to vector<1x8x128xf32>
      %c0_38 = arith.constant 0 : index
      %c0_39 = arith.constant 0 : index
      %c0_40 = arith.constant 0 : index
      %75 = vector.load %arg6[%c0_38, %c0_39, %c0_40] : memref<1x8x128xf32, #tpu.memory_space<vmem>>, vector<1x8x128xf32>
      tpu.vector_store %arg6[%c0_38, %c0_39, %c0_40], %74 {strides = array<i32>} : memref<1x8x128xf32, #tpu.memory_space<vmem>>, vector<1x8x128xf32>,
    } else {
    }
    return
  }
  func.func @transform_0(%arg0: i32, %arg1: i32) -> (i32, i32) {
    %c1_i32 = arith.constant 1 : i32
    %0 = arith.muli %arg0, %c1_i32 : i32
    %1 = arith.addi %0, %arg1 : i32
    %c0_i32 = arith.constant 0 : i32
    %c0_i32_0 = arith.constant 0 : i32
    return %1, %c0_i32 : i32, i32
  }
  func.func @transform_1(%arg0: i32, %arg1: i32) -> (i32, i32) {
    %c1_i32 = arith.constant 1 : i32
    %0 = arith.muli %arg0, %c1_i32 : i32
    %1 = arith.addi %0, %arg1 : i32
    %c0_i32 = arith.constant 0 : i32
    %c0_i32_0 = arith.constant 0 : i32
    return %1, %c0_i32 : i32, i32
  }
  func.func @transform_2(%arg0: i32, %arg1: i32) -> (i32, i32) {
    %c1_i32 = arith.constant 1 : i32
    %0 = arith.muli %arg0, %c1_i32 : i32
    %1 = arith.addi %0, %arg1 : i32
    %c0_i32 = arith.constant 0 : i32
    %c0_i32_0 = arith.constant 0 : i32
    return %1, %c0_i32 : i32, i32
  }
  func.func @transform_3(%arg0: i32, %arg1: i32) -> (i32, i32) {
    %c1_i32 = arith.constant 1 : i32
    %0 = arith.muli %arg0, %c1_i32 : i32
    %1 = arith.addi %0, %arg1 : i32
    %c0_i32 = arith.constant 0 : i32
    %c0_i32_0 = arith.constant 0 : i32
    return %1, %c0_i32 : i32, i32
  }
  func.func @transform_4(%arg0: i32, %arg1: i32) -> (i32, i32, i32) {
    %c0_i32 = arith.constant 0 : i32
    %c0_i32_0 = arith.constant 0 : i32
    %c0_i32_1 = arith.constant 0 : i32
    return %arg0, %c0_i32, %c0_i32_0 : i32, i32, i32
  }
}

</mosaic_0001>

<llo_original>
// kernel: tpu_custom_call.1
$region0: #{tpu_custom_call.1}
  #allocation0 [shape = 'u32[]', space=smem, size = 0x4, offset = 0x4, fixed_abs, tag = 'smem constant byte address 0x4 - core index']
  #allocation1 [shape = 'u32[144,128]{1,0:T(1,128)}', space=vmem, size = 0x12000, scoped, tag = 'internal scratch']
  #allocation2 [shape = 'f32[16,1]{1,0:T(8,128)}', space=vmem, size = 0x2000, scoped, tag = 'scratch operand']
  #allocation3 [shape = 'f32[16,4]{1,0:T(8,128)}', space=vmem, size = 0x2000, scoped, tag = 'scratch operand']
  #allocation4 [shape = 'f32[16,1]{1,0:T(8,128)}', space=vmem, size = 0x2000, scoped, tag = 'scratch operand']
  %s0 = inlined_call_operand.vmem [shape: f32[16,4], index: 0, kind: input, shape index: {}]
  %s1 = inlined_call_operand.vmem [shape: s32[16,1], index: 1, kind: input, shape index: {}]
  %s2 = inlined_call_operand.vmem [shape: f32[16,4], index: 2, kind: input, shape index: {}]
  %s3 = inlined_call_operand.vmem [shape: f32[16,4], index: 3, kind: input, shape index: {}]
  %s4 = inlined_call_operand.hbm [shape: f32[1,8,128], index: 4, kind: output, shape index: {}]
  %s5 = sld [smem:[#allocation0]]
  $region34: #{tpu_custom_call.1} parent=0
    _
  %s7 = ssub.s32 1, %s5
  %s8 = scalar_select 0, %s7, %s5
  $region1: #{tpu_custom_call.1} parent=0
    #allocation5 [shape = 'u8[4096]{0}', space=vmem, size = 0x1000, scoped, tag = 'output window, operand 0, single buffered']
    #allocation6 [shape = 's32[1]{0}', space=sflag, size = 0x4, scoped, tag = 'scoped memory for tpu_custom_call.1']
    %9 = vsyncpa [#allocation6], 0
    // Predicated region
    $region2: #{tpu_custom_call.1} parent=1 // pred_check
      _
    $region3: #{tpu_custom_call.1} parent=1 // pred_check_branch
      %11 = sbr.rel (0) target = $region5
    $region4: #{tpu_custom_call.1} parent=1 // pred_region
      %s12 = sadd.s32 0, 0
      %s13 = smul.u32 2, %s12
      %p14 = scmp.lt.s32.totalorder %s13, 1
      %s15 = scalar_select %p14, %s13, 1
      %s16 = smul.addr %s15, 8
      %s17 = scalar_lea.vmem %s0, %s16
      %s18 = sadd.s32 0, 0
      %s19 = smul.u32 2, %s18
    $region5: #{tpu_custom_call.1} parent=1 // pred_fallthru
      _
    // Predicated region
    $region6: #{tpu_custom_call.1} parent=1 // pred_check
      _
    $region7: #{tpu_custom_call.1} parent=1 // pred_check_branch
      %21 = sbr.rel (0) target = $region9
    $region8: #{tpu_custom_call.1} parent=1 // pred_region
      %s22 = sadd.s32 0, 0
      %s23 = smul.u32 2, %s22
      %p24 = scmp.lt.s32.totalorder %s23, 1
      %s25 = scalar_select %p24, %s23, 1
      %s26 = smul.addr %s25, 8
      %s27 = scalar_lea.vmem %s1, %s26
      %s28 = sadd.s32 0, 0
      %s29 = smul.u32 2, %s28
    $region9: #{tpu_custom_call.1} parent=1 // pred_fallthru
      _
    // Predicated region
    $region10: #{tpu_custom_call.1} parent=1 // pred_check
      _
    $region11: #{tpu_custom_call.1} parent=1 // pred_check_branch
      %31 = sbr.rel (0) target = $region13
    $region12: #{tpu_custom_call.1} parent=1 // pred_region
      %s32 = sadd.s32 0, 0
      %s33 = smul.u32 2, %s32
      %p34 = scmp.lt.s32.totalorder %s33, 1
      %s35 = scalar_select %p34, %s33, 1
      %s36 = smul.addr %s35, 8
      %s37 = scalar_lea.vmem %s2, %s36
      %s38 = sadd.s32 0, 0
      %s39 = smul.u32 2, %s38
    $region13: #{tpu_custom_call.1} parent=1 // pred_fallthru
      _
    // Predicated region
    $region14: #{tpu_custom_call.1} parent=1 // pred_check
      _
    $region15: #{tpu_custom_call.1} parent=1 // pred_check_branch
      %41 = sbr.rel (0) target = $region17
    $region16: #{tpu_custom_call.1} parent=1 // pred_region
      %s42 = sadd.s32 0, 0
      %s43 = smul.u32 2, %s42
      %p44 = scmp.lt.s32.totalorder %s43, 1
      %s45 = scalar_select %p44, %s43, 1
      %s46 = smul.addr %s45, 8
      %s47 = scalar_lea.vmem %s3, %s46
      %s48 = sadd.s32 0, 0
      %s49 = smul.u32 2, %s48
    $region17: #{tpu_custom_call.1} parent=1 // pred_fallthru
      _
    %s50 = sadd.s32 0, 0
    %s51 = smul.u32 2, %s50
    %p52 = scmp.lt.s32.totalorder %s51, 1
    %s53 = scalar_select %p52, %s51, 1
    %s54 = smul.addr %s53, 8
    %s55 = scalar_lea.vmem %s0, %s54
    %s56 = sadd.s32 0, 0
    %s57 = smul.u32 2, %s56
    %p58 = scmp.lt.s32.totalorder %s57, 1
    %s59 = scalar_select %p58, %s57, 1
    %s60 = smul.addr %s59, 8
    %s61 = scalar_lea.vmem %s1, %s60
    %s62 = sadd.s32 0, 0
    %s63 = smul.u32 2, %s62
    %p64 = scmp.lt.s32.totalorder %s63, 1
    %s65 = scalar_select %p64, %s63, 1
    %s66 = smul.addr %s65, 8
    %s67 = scalar_lea.vmem %s2, %s66
    %s68 = sadd.s32 0, 0
    %s69 = smul.u32 2, %s68
    %p70 = scmp.lt.s32.totalorder %s69, 1
    %s71 = scalar_select %p70, %s69, 1
    %s72 = smul.addr %s71, 8
    %s73 = scalar_lea.vmem %s3, %s72
    %s74 = sadd.s32 0, 0
    %s75 = smul.u32 2, %s74
    %p76 = scmp.lt.s32.totalorder %s75, 1
    %s77 = scalar_select %p76, %s75, 1
    %s78 = smul.addr %s77, 8
    %s79 = scalar_lea.vmem %s0, %s78
    %s80 = sadd.s32 0, 0
    %s81 = smul.u32 2, %s80
    %s82 = sadd.s32 0, 0
    %s83 = smul.u32 2, %s82
    %p84 = scmp.lt.s32.totalorder %s83, 1
    %s85 = scalar_select %p84, %s83, 1
    %s86 = smul.addr %s85, 8
    %s87 = scalar_lea.vmem %s1, %s86
    %s88 = sadd.s32 0, 0
    %s89 = smul.u32 2, %s88
    %s90 = sadd.s32 0, 0
    %s91 = smul.u32 2, %s90
    %p92 = scmp.lt.s32.totalorder %s91, 1
    %s93 = scalar_select %p92, %s91, 1
    %s94 = smul.addr %s93, 8
    %s95 = scalar_lea.vmem %s2, %s94
    %s96 = sadd.s32 0, 0
    %s97 = smul.u32 2, %s96
    %s98 = sadd.s32 0, 0
    %s99 = smul.u32 2, %s98
    %p100 = scmp.lt.s32.totalorder %s99, 1
    %s101 = scalar_select %p100, %s99, 1
    %s102 = smul.addr %s101, 8
    %s103 = scalar_lea.vmem %s3, %s102
    %s104 = sadd.s32 0, 0
    %s105 = smul.u32 2, %s104
    %p106 = scmp.eq.s32.totalorder 0, 0
    // Predicated region
    $region18: #{tpu_custom_call.1} parent=1 // pred_check
      %p107 = pneg %p106
    $region19: #{tpu_custom_call.1} parent=1 // pred_check_branch
      %109 = sbr.rel (%p107) target = $region21
    $region20: #{tpu_custom_call.1} parent=1 // pred_region
      %vm110 = vcmask 7168
      %111 = vst.msk [vmem:[#allocation2] sm:$0xff] %vm110, 0.0
      %112 = vst.msk [vmem:[#allocation2 + $0x8] sm:$0xff] %vm110, 0.0
      %vm113 = vcmask 31744
      %114 = vst.msk [vmem:[#allocation3] sm:$0xff] %vm113, 0.0
      %115 = vst.msk [vmem:[#allocation3 + $0x8] sm:$0xff] %vm113, 0.0
      %116 = vst.msk [vmem:[#allocation4] sm:$0xff] %vm110, 0.0
      %117 = vst.msk [vmem:[#allocation4 + $0x8] sm:$0xff] %vm110, 0.0
    $region21: #{tpu_custom_call.1} parent=1 // pred_fallthru
      _
    %v118 = vld [vmem:[%s79] sm:$0xff]
    %v119 = vld [vmem:[%s79 + $0x8] sm:$0xff]
    %v120 = vld [vmem:[%s87] sm:$0xff]
    %v121 = vld [vmem:[%s87 + $0x8] sm:$0xff]
    %v122 = vld [vmem:[%s95] sm:$0xff]
    %v123 = vld [vmem:[%s95 + $0x8] sm:$0xff]
    %v124 = vld [vmem:[%s103] sm:$0xff]
    %v125 = vld [vmem:[%s103 + $0x8] sm:$0xff]
    %vm126 = vcmask 31744
    %v127 = vsel %vm126, %v118, -inf
    %128 = vmax.xlane.f32.xlu0 %v127
    %v129 = vpop.xlane.xlu0 %128
    %v130 = vsel %vm126, %v119, -inf
    %131 = vmax.xlane.f32.xlu0 %v130
    %v132 = vpop.xlane.xlu0 %131
    %v133 = vsub.f32 %v118, %v129
    %v134 = vsub.f32 %v119, %v132
    %v135 = vmul.f32 %v133, 1.442695
    %v136 = vpow.pop %v135
    %v137 = vmul.f32 %v134, 1.442695
    %v138 = vpow.pop %v137
    %v139 = vsel %vm126, %v136, 0.0
    %140 = vadd.xlane.f32.xlu0 %v139
    %v141 = vpop.xlane.xlu0 %140
    %v142 = vsel %vm126, %v138, 0.0
    %143 = vadd.xlane.f32.xlu0 %v142
    %v144 = vpop.xlane.xlu0 %143
    %v145 = vlog2.pop %v141
    %v146 = vmul.f32 %v145, 0.6931472
    %v147 = vlog2.pop %v144
    %v148 = vmul.f32 %v147, 0.6931472
    %v149 = vlaneseq
    %v150 = vand.u32 %v149, 127
    %151 = vset.pattern.permute.xlu0 0
    %152 = vperm.xlu0 %151, %v120
    %v153 = vpop.permute.xlu0 %152
    %154 = vset.pattern.permute.xlu0 0
    %155 = vperm.xlu0 %154, %v121
    %v156 = vpop.permute.xlu0 %155
    %vm157 = vcmp.eq.s32.totalorder %v150, %v153
    %vm158 = vcmp.eq.s32.totalorder %v150, %v156
    %v159 = vsel %vm157, %v133, 0.0
    %v160 = vsel %vm158, %v134, 0.0
    %v161 = vsel %vm126, %v159, 0.0
    %162 = vadd.xlane.f32.xlu0 %v161
    %v163 = vpop.xlane.xlu0 %162
    %v164 = vsel %vm126, %v160, 0.0
    %165 = vadd.xlane.f32.xlu0 %v164
    %v166 = vpop.xlane.xlu0 %165
    %v167 = vsub.f32 %v146, %v163
    %v168 = vsub.f32 %v148, %v166
    %vm169 = vcmp.gt.s32.totalorder %v120, 0
    %vm170 = vcmp.gt.s32.totalorder %v121, 0
    %v171 = vsub.f32 %v122, %v124
    %v172 = vsub.f32 %v123, %v125
    %v173 = vand.u32 2147483647, %v171
    %v174 = vand.u32 2147483647, %v172
    %v175 = vsel %vm169, 1, 0
    %v176 = vsel %vm170, 1, 0
    %177 = vset.pattern.permute.xlu0 0
    %178 = vperm.xlu0 %177, %v175
    %v179 = vpop.permute.xlu0 %178
    %180 = vset.pattern.permute.xlu0 0
    %181 = vperm.xlu0 %180, %v176
    %v182 = vpop.permute.xlu0 %181
    %vm183 = vcmp.eq.s32.totalorder %v179, 1
    %vm184 = vcmp.eq.s32.totalorder %v182, 1
    %v185 = vsel %vm183, %v173, 0.0
    %v186 = vsel %vm184, %v174, 0.0
    %v187 = vcvt.s32.f32 %v175
    %v188 = vcvt.s32.f32 %v176
    %v189 = vld [vmem:[#allocation2] sm:$0xff]
    %v190 = vld [vmem:[#allocation2 + $0x8] sm:$0xff]
    %v191 = vadd.f32 %v189, %v167
    %v192 = vadd.f32 %v190, %v168
    %vm193 = vcmask 7168
    %194 = vst.msk [vmem:[#allocation2] sm:$0xff] %vm193, %v191
    %195 = vst.msk [vmem:[#allocation2 + $0x8] sm:$0xff] %vm193, %v192
    %v196 = vld [vmem:[#allocation3] sm:$0xff]
    %v197 = vld [vmem:[#allocation3 + $0x8] sm:$0xff]
    %v198 = vadd.f32 %v196, %v185
    %v199 = vadd.f32 %v197, %v186
    %200 = vst.msk [vmem:[#allocation3] sm:$0xff] %vm126, %v198
    %201 = vst.msk [vmem:[#allocation3 + $0x8] sm:$0xff] %vm126, %v199
    %v202 = vld [vmem:[#allocation4] sm:$0xff]
    %v203 = vld [vmem:[#allocation4 + $0x8] sm:$0xff]
    %v204 = vadd.f32 %v202, %v187
    %v205 = vadd.f32 %v203, %v188
    %206 = vst.msk [vmem:[#allocation4] sm:$0xff] %vm193, %v204
    %207 = vst.msk [vmem:[#allocation4 + $0x8] sm:$0xff] %vm193, %v205
    // Predicated region
    $region22: #{tpu_custom_call.1} parent=1 // pred_check
      %p208 = pneg %p106
    $region23: #{tpu_custom_call.1} parent=1 // pred_check_branch
      %210 = sbr.rel (%p208) target = $region25
    $region24: #{tpu_custom_call.1} parent=1 // pred_region
      %v211 = vld [vmem:[#allocation2] sm:$0xff]
      %v212 = vld [vmem:[#allocation2 + $0x8] sm:$0xff]
      %v213 = vsel %vm193, %v211, 0.0
      %v214 = vsel %vm193, %v212, 0.0
      %v215 = vadd.f32 %v213, %v214
      %216 = vadd.xlane.f32.xlu0 %v215
      %v217 = vpop.xlane.xlu0 %216
      %v218 = vrot.slane %v217, 4
      %v219 = vadd.f32 %v217, %v218
      %v220 = vrot.slane %v219, 2
      %v221 = vadd.f32 %v219, %v220
      %v222 = vrot.slane %v221, 1
      %v223 = vadd.f32 %v221, %v222
      %s224 = vtos %v223
      %v225 = vld [vmem:[#allocation3] sm:$0xff]
      %v226 = vld [vmem:[#allocation3 + $0x8] sm:$0xff]
      %v227 = vsel %vm126, %v225, 0.0
      %v228 = vsel %vm126, %v226, 0.0
      %v229 = vadd.f32 %v227, %v228
      %230 = vadd.xlane.f32.xlu0 %v229
      %v231 = vpop.xlane.xlu0 %230
      %v232 = vrot.slane %v231, 4
      %v233 = vadd.f32 %v231, %v232
      %v234 = vrot.slane %v233, 2
      %v235 = vadd.f32 %v233, %v234
      %v236 = vrot.slane %v235, 1
      %v237 = vadd.f32 %v235, %v236
      %s238 = vtos %v237
      %v239 = vld [vmem:[#allocation4] sm:$0xff]
      %v240 = vld [vmem:[#allocation4 + $0x8] sm:$0xff]
      %v241 = vsel %vm193, %v239, 0.0
      %v242 = vsel %vm193, %v240, 0.0
      %v243 = vadd.f32 %v241, %v242
      %244 = vadd.xlane.f32.xlu0 %v243
      %v245 = vpop.xlane.xlu0 %244
      %v246 = vrot.slane %v245, 4
      %v247 = vadd.f32 %v245, %v246
      %v248 = vrot.slane %v247, 2
      %v249 = vadd.f32 %v247, %v248
      %v250 = vrot.slane %v249, 1
      %v251 = vadd.f32 %v249, %v250
      %s252 = vtos %v251
      %vm253 = vcmp.eq.s32.totalorder %v150, 0
      %vm254 = vcmp.eq.s32.totalorder %v150, 1
      %vm255 = vcmp.eq.s32.totalorder %v150, 2
      %v256 = vstv %s252
      %v257 = vsel %vm255, %v256, 0.0
      %v258 = vstv %s238
      %v259 = vsel %vm254, %v258, %v257
      %v260 = vstv %s224
      %v261 = vsel %vm253, %v260, %v259
      %262 = vst [vmem:[#allocation5] sm:$0xff] %v261
    $region25: #{tpu_custom_call.1} parent=1 // pred_fallthru
      _
    // Predicated region
    $region26: #{tpu_custom_call.1} parent=1 // pred_check
      _
    $region27: #{tpu_custom_call.1} parent=1 // pred_check_branch
      %264 = sbr.rel (0) target = $region29
    $region28: #{tpu_custom_call.1} parent=1 // pred_region
      %s266 = ssub.s32 128, 128
      %267 = vsyncadd [#allocation6], %s266
      %s269 = sshll.u32 [#allocation5], 4
      %s270 = int_to_ptr.vmem [resolvable:$true] %s269
      %272 = dma.vmem_to_hbm [thread:$0]  %s270, 128, %s4, [#allocation6]
    $region29: #{tpu_custom_call.1} parent=1 // pred_fallthru
      _
    // Predicated region
    $region30: #{tpu_custom_call.1} parent=1 // pred_check
      _
    $region31: #{tpu_custom_call.1} parent=1 // pred_check_branch
      %274 = sbr.rel (0) target = $region33
    $region32: #{tpu_custom_call.1} parent=1 // pred_region
      %275 = dma.done [#allocation6], 128
    $region33: #{tpu_custom_call.1} parent=1 // pred_fallthru
      _
    %276 = vsyncpa [#allocation6], 1

</llo_original>
